<compile_context>
chip_gen: v7x
topology: tpu7x:2x2x1
jax: 0.10.0
libtpu: 0.0.40
codegen_flags: <defaults>
</compile_context>

<pallas_src>
import functools
import math

import jax
import jax.numpy as jnp
from jax.experimental import pallas as pl
from jax.experimental.pallas import tpu as pltpu


def _dice_bce_kernel(x_ref, t_ref, w_ref, o_ref, *,
                     smooth, d, tile_d, per_core, needs_mask):
    # x_ref, t_ref: (N, tile_d) logits / targets for this D-tile
    # w_ref: (N, 1) per-sample weights
    # o_ref: (1, 8, 128) per-core accumulator block (value broadcast; [0,0,0] used)
    c = pl.program_id(0)
    i = pl.program_id(1)

    @pl.when(i == 0)
    def _():
        o_ref[...] = jnp.zeros_like(o_ref)

    x = x_ref[...].astype(jnp.float32)
    t = t_ref[...].astype(jnp.float32)
    w = w_ref[...].astype(jnp.float32)

    # inputs = sigmoid(inputs)
    s = jax.nn.sigmoid(x)

    # dice_loss = 1 - (2*s*t + smooth) / (s.sum(dim=0) + t.sum(dim=0) + smooth)
    # The batch-axis sum is per pixel column, so splitting D across tiles is
    # exact.  One fused column sum + one reciprocal per column, VPU multiplies.
    inv_denom = 1.0 / (jnp.sum(s + t, axis=0, keepdims=True) + smooth)
    dice = 1.0 - (2.0 * s * t + smooth) * inv_denom                   # (N, tile_d)

    # bce = F.binary_cross_entropy(s, t, reduction='none')
    # log(s) via the log-sigmoid identity (saves one EUP transcendental);
    # clamp at -100 afterwards and match PyTorch's log(1)=0 when s rounds to 1.
    log_1ms_raw = jnp.log1p(-s)
    log_s = jnp.maximum(jnp.where(s < 1.0, x + log_1ms_raw, 0.0), -100.0)
    log_1ms = jnp.maximum(log_1ms_raw, -100.0)
    bce = -(t * log_s + (1.0 - t) * log_1ms)                          # (N, tile_d)

    combined = bce + dice

    if needs_mask:
        # Zero out lanes past the real D extent (ragged last tile) and whole
        # duplicated tiles produced by the clamped index map.
        tile_idx = c * per_core + i
        col = tile_idx * tile_d + jax.lax.broadcasted_iota(
            jnp.int32, (1, tile_d), 1)
        combined = jnp.where(col < d, combined, 0.0)

    # Reassociated weighted sum: per-row sum over D, weight, reduce rows.
    row_sum = jnp.sum(combined, axis=1, keepdims=True)                # (N, 1)
    o_ref[...] += jnp.sum(row_sum * w)                                # scalar bcast


def _round_up(x, m):
    return (x + m - 1) // m * m


def dice_bce_loss(inputs, targets, weights=None, smooth=1.0, max_tile_d=None):
    """aggregate=True forward of DiceBCELoss. inputs/targets: (N, C, H, W)."""
    n = inputs.shape[0]
    d = math.prod(inputs.shape[1:])
    if weights is None:
        weights = jnp.ones((n, 1), dtype=jnp.float32)

    x2d = inputs.reshape(n, d)
    t2d = targets.reshape(n, d)
    w2d = weights.reshape(n, 1).astype(jnp.float32)

    # Tile the D (lane) axis from a VMEM budget: per lane we pay
    #   2 streamed inputs x 2 pipeline buffers x n x 4 B  (x/t tiles)
    # + ~4 live f32 intermediates (s, dice, bce, combined) x n x 4 B.
    # ~20 MiB keeps headroom under v7x's 32 MiB scoped default; per-step HBM
    # transfers reach multiple MiB, amortizing the ~0.35 us grid-step overhead.
    d128 = _round_up(d, 128)
    vmem_budget = 20 * 1024 * 1024
    bytes_per_lane = (2 * 2 + 4) * n * 4
    tile_d = (vmem_budget // bytes_per_lane) // 128 * 128
    tile_d = max(128, min(tile_d, d128))
    if max_tile_d is not None:                      # test / tuning override
        tile_d = max(128, min(tile_d, _round_up(max_tile_d, 128)))

    grid_d = pl.cdiv(d, tile_d)
    # Leading "parallel" axis: shards the D reduction across the 2 TensorCores
    # on v7x; on single-core chips it just runs serially (no extra cost).
    num_par = 2 if grid_d >= 2 else 1
    per_core = pl.cdiv(grid_d, num_par)
    needs_mask = (num_par * per_core * tile_d) != d

    def xt_map(c, i):
        # Clamp so a core's last (possibly duplicated) step never indexes a
        # fully out-of-range block; its contribution is masked in-kernel.
        return 0, jnp.minimum(c * per_core + i, grid_d - 1)

    kernel = functools.partial(
        _dice_bce_kernel, smooth=float(smooth), d=d, tile_d=tile_d,
        per_core=per_core, needs_mask=needs_mask)

    out = pl.pallas_call(
        kernel,
        out_shape=jax.ShapeDtypeStruct((num_par, 8, 128), jnp.float32),
        grid_spec=pltpu.PrefetchScalarGridSpec(
            num_scalar_prefetch=0,
            grid=(num_par, per_core),
            in_specs=[
                pl.BlockSpec((n, tile_d), xt_map),
                pl.BlockSpec((n, tile_d), xt_map),
                pl.BlockSpec((n, 1), lambda c, i: (0, 0)),
            ],
            out_specs=pl.BlockSpec((1, 8, 128), lambda c, i: (c, 0, 0)),
        ),
        compiler_params=pltpu.CompilerParams(
            dimension_semantics=("parallel", "arbitrary"),
            # 32 MiB is safe on v7x (64 MiB physical); can be raised to 64-96
            # MiB on v5e/v6e (128 MiB physical) for very large batches.
            vmem_limit_bytes=32 * 1024 * 1024,
        ),
    )(x2d, t2d, w2d)

    # (combined * weights).sum() / len(targets); sum the per-core partials.
    return jnp.sum(out[:, 0, 0]) / n


def _reference(inputs, targets, weights, smooth=1.0):
    n = inputs.shape[0]
    if weights is None:
        weights = jnp.ones((n, 1, 1, 1), dtype=jnp.float32)
    s = jax.nn.sigmoid(inputs.astype(jnp.float32))
    t = targets.astype(jnp.float32)
    denom = s.sum(axis=0) + t.sum(axis=0) + smooth
    dice = 1.0 - (2.0 * s * t + smooth) / denom
    bce = -(t * jnp.maximum(jnp.log(s), -100.0)
            + (1.0 - t) * jnp.maximum(jnp.log1p(-s), -100.0))
    combined = bce + dice
    return (combined * weights).sum() / n


if __name__ == "__main__":
    key = jax.random.PRNGKey(0)
    k1, k2 = jax.random.split(key)

    # Primary small case (single tile).
    N, C, H, W = 2, 4, 16, 16
    inputs = jax.random.normal(k1, (N, C, H, W), dtype=jnp.float32)   # logits
    targets = jax.random.bernoulli(k2, 0.5, (N, C, H, W)).astype(jnp.float32)

    loss = dice_bce_loss(inputs, targets, weights=None, smooth=1.0)
    loss = jax.block_until_ready(loss)
    ref = _reference(inputs, targets, None, smooth=1.0)
    assert jnp.allclose(loss, ref, rtol=1e-5, atol=1e-5), (loss, ref)

    # Second case exercising the multi-tile / ragged-D / split-reduction path
    # (D = 4*23*23 = 2116 is not a multiple of 128; tile_d forced small).
    k3, k4 = jax.random.split(jax.random.PRNGKey(1))
    N2, C2, H2, W2 = 2, 4, 23, 23
    inputs2 = jax.random.normal(k3, (N2, C2, H2, W2), dtype=jnp.float32)
    targets2 = jax.random.bernoulli(k4, 0.5, (N2, C2, H2, W2)).astype(jnp.float32)

    loss2 = dice_bce_loss(inputs2, targets2, weights=None, smooth=1.0,
                          max_tile_d=256)
    loss2 = jax.block_until_ready(loss2)
    ref2 = _reference(inputs2, targets2, None, smooth=1.0)
    assert jnp.allclose(loss2, ref2, rtol=1e-5, atol=1e-5), (loss2, ref2)

    print("KERNEL_OK")
</pallas_src>

<mosaic_0001>
module attributes {stable_mosaic.version = 11 : i64} {
  func.func @_dice_bce_kernel(%arg0: i32, %arg1: i32, %arg2: memref<2x1024xf32, #tpu.memory_space<vmem>>, %arg3: memref<2x1024xf32, #tpu.memory_space<vmem>>, %arg4: memref<2x1xf32, #tpu.memory_space<vmem>>, %arg5: memref<1x8x128xf32, #tpu.memory_space<vmem>>) attributes {dimension_semantics = [#tpu.dimension_semantics<parallel>, #tpu.dimension_semantics<arbitrary>], iteration_bounds = array<i64: 1, 1>, scalar_prefetch = 0 : i64, scratch_operands = 0 : i64, tpu.core_type = #tpu.core_type<tc>, window_params = [{transform_indices = @transform_0, window_bounds = array<i64: 2, 1024>}, {transform_indices = @transform_1, window_bounds = array<i64: 2, 1024>}, {pipeline_mode = #tpu.pipeline_mode<synchronous>, transform_indices = @transform_2, window_bounds = array<i64: 2, 1>}, {transform_indices = @transform_3, window_bounds = array<i64: 1, 8, 128>}]} {
    %c0_i32 = arith.constant 0 : i32
    %0 = arith.cmpi eq, %arg1, %c0_i32 : i32
    %1 = arith.extui %0 : i1 to i32
    %c0_i32_0 = arith.constant 0 : i32
    %2 = arith.cmpi ne, %1, %c0_i32_0 : i32
    scf.if %2 {
      %cst_27 = arith.constant 0.000000e+00 : f32
      %58 = vector.broadcast %cst_27 : f32 to vector<1x8x128xf32>
      %c0_28 = arith.constant 0 : index
      %c0_29 = arith.constant 0 : index
      %c0_30 = arith.constant 0 : index
      %59 = vector.load %arg5[%c0_28, %c0_29, %c0_30] : memref<1x8x128xf32, #tpu.memory_space<vmem>>, vector<1x8x128xf32>
      tpu.vector_store %arg5[%c0_28, %c0_29, %c0_30], %58 {strides = array<i32>} : memref<1x8x128xf32, #tpu.memory_space<vmem>>, vector<1x8x128xf32>,
    } else {
    }
    %c0 = arith.constant 0 : index
    %c0_1 = arith.constant 0 : index
    %3 = vector.load %arg2[%c0, %c0_1] : memref<2x1024xf32, #tpu.memory_space<vmem>>, vector<2x1024xf32>
    %c0_2 = arith.constant 0 : index
    %c0_3 = arith.constant 0 : index
    %4 = vector.load %arg3[%c0_2, %c0_3] : memref<2x1024xf32, #tpu.memory_space<vmem>>, vector<2x1024xf32>
    %c0_4 = arith.constant 0 : index
    %c0_5 = arith.constant 0 : index
    %5 = vector.load %arg4[%c0_4, %c0_5] : memref<2x1xf32, #tpu.memory_space<vmem>>, vector<2x1xf32>
    %6 = arith.negf %3 : vector<2x1024xf32>
    %7 = math.exp %6 : vector<2x1024xf32>
    %cst = arith.constant 1.000000e+00 : f32
    %8 = vector.broadcast %cst : f32 to vector<2x1024xf32>
    %9 = arith.addf %8, %7 : vector<2x1024xf32>
    %10 = arith.divf %8, %9 : vector<2x1024xf32>
    %11 = arith.addf %10, %4 : vector<2x1024xf32>
    %cst_6 = arith.constant dense<0.000000e+00> : vector<1024xf32>
    %12 = vector.multi_reduction <add>, %11, %cst_6 [0] : vector<2x1024xf32> to vector<1024xf32>
    %13 = vector.shape_cast %12 : vector<1024xf32> to vector<1x1024xf32>
    %cst_7 = arith.constant 1.000000e+00 : f32
    %14 = vector.broadcast %cst_7 : f32 to vector<1x1024xf32>
    %15 = arith.addf %13, %14 : vector<1x1024xf32>
    %cst_8 = arith.constant 1.000000e+00 : f32
    %16 = vector.broadcast %cst_8 : f32 to vector<1x1024xf32>
    %17 = arith.divf %16, %15 : vector<1x1024xf32>
    %cst_9 = arith.constant 2.000000e+00 : f32
    %18 = vector.broadcast %cst_9 : f32 to vector<2x1024xf32>
    %19 = arith.mulf %18, %10 : vector<2x1024xf32>
    %20 = arith.mulf %19, %4 : vector<2x1024xf32>
    %cst_10 = arith.constant 1.000000e+00 : f32
    %21 = vector.broadcast %cst_10 : f32 to vector<2x1024xf32>
    %22 = arith.addf %20, %21 : vector<2x1024xf32>
    %23 = vector.broadcast %17 : vector<1x1024xf32> to vector<2x1024xf32>
    %24 = arith.mulf %22, %23 : vector<2x1024xf32>
    %cst_11 = arith.constant 1.000000e+00 : f32
    %25 = vector.broadcast %cst_11 : f32 to vector<2x1024xf32>
    %26 = arith.subf %25, %24 : vector<2x1024xf32>
    %cst_12 = arith.constant 0.000000e+00 : f32
    %27 = vector.broadcast %cst_12 : f32 to vector<2x1024xf32>
    %28 = arith.subf %27, %10 : vector<2x1024xf32>
    %29 = math.log1p %28 : vector<2x1024xf32>
    %cst_13 = arith.constant 1.000000e+00 : f32
    %30 = vector.broadcast %cst_13 : f32 to vector<2x1024xf32>
    %31 = arith.cmpf olt, %10, %30 : vector<2x1024xf32>
    %32 = arith.addf %3, %29 : vector<2x1024xf32>
    %cst_14 = arith.constant 0.000000e+00 : f32
    %33 = vector.broadcast %cst_14 : f32 to vector<2x1024xf32>
    %34 = arith.select %31, %32, %33 : vector<2x1024xi1>, vector<2x1024xf32>
    %cst_15 = arith.constant -1.000000e+02 : f32
    %35 = vector.broadcast %cst_15 : f32 to vector<2x1024xf32>
    %36 = arith.maximumf %34, %35 : vector<2x1024xf32>
    %cst_16 = arith.constant -1.000000e+02 : f32
    %37 = vector.broadcast %cst_16 : f32 to vector<2x1024xf32>
    %38 = arith.maximumf %29, %37 : vector<2x1024xf32>
    %39 = arith.mulf %4, %36 : vector<2x1024xf32>
    %cst_17 = arith.constant 1.000000e+00 : f32
    %40 = vector.broadcast %cst_17 : f32 to vector<2x1024xf32>
    %41 = arith.subf %40, %4 : vector<2x1024xf32>
    %42 = arith.mulf %41, %38 : vector<2x1024xf32>
    %43 = arith.addf %39, %42 : vector<2x1024xf32>
    %cst_18 = arith.constant 0.000000e+00 : f32
    %44 = vector.broadcast %cst_18 : f32 to vector<2x1024xf32>
    %45 = arith.subf %44, %43 : vector<2x1024xf32>
    %46 = arith.addf %45, %26 : vector<2x1024xf32>
    %cst_19 = arith.constant dense<0.000000e+00> : vector<2xf32>
    %47 = vector.multi_reduction <add>, %46, %cst_19 [1] : vector<2x1024xf32> to vector<2xf32>
    %48 = vector.shape_cast %47 : vector<2xf32> to vector<2x1xf32>
    %c0_20 = arith.constant 0 : index
    %c0_21 = arith.constant 0 : index
    %c0_22 = arith.constant 0 : index
    %49 = vector.load %arg5[%c0_20, %c0_21, %c0_22] : memref<1x8x128xf32, #tpu.memory_space<vmem>>, vector<1x8x128xf32>
    %50 = arith.mulf %48, %5 : vector<2x1xf32>
    %51 = vector.shape_cast %50 : vector<2x1xf32> to vector<1x2x1xf32>
    %cst_23 = arith.constant dense<0.000000e+00> : vector<1xf32>
    %52 = vector.multi_reduction <add>, %51, %cst_23 [1, 2] : vector<1x2x1xf32> to vector<1xf32>
    %53 = vector.shape_cast %52 : vector<1xf32> to vector<1x1x1xf32>
    %54 = vector.extract %53[0, 0, 0] : f32 from vector<1x1x1xf32>
    %55 = vector.broadcast %54 : f32 to vector<1x8x128xf32>
    %56 = arith.addf %49, %55 : vector<1x8x128xf32>
    %c0_24 = arith.constant 0 : index
    %c0_25 = arith.constant 0 : index
    %c0_26 = arith.constant 0 : index
    %57 = vector.load %arg5[%c0_24, %c0_25, %c0_26] : memref<1x8x128xf32, #tpu.memory_space<vmem>>, vector<1x8x128xf32>
    tpu.vector_store %arg5[%c0_24, %c0_25, %c0_26], %56 {strides = array<i32>} : memref<1x8x128xf32, #tpu.memory_space<vmem>>, vector<1x8x128xf32>,
    return
  }
  func.func @transform_0(%arg0: i32, %arg1: i32) -> (i32, i32) {
    %c1_i32 = arith.constant 1 : i32
    %0 = arith.muli %arg0, %c1_i32 : i32
    %1 = arith.addi %0, %arg1 : i32
    %c0_i32 = arith.constant 0 : i32
    %2 = arith.minsi %1, %c0_i32 : i32
    %c0_i32_0 = arith.constant 0 : i32
    %c0_i32_1 = arith.constant 0 : i32
    return %c0_i32_0, %2 : i32, i32
  }
  func.func @transform_1(%arg0: i32, %arg1: i32) -> (i32, i32) {
    %c1_i32 = arith.constant 1 : i32
    %0 = arith.muli %arg0, %c1_i32 : i32
    %1 = arith.addi %0, %arg1 : i32
    %c0_i32 = arith.constant 0 : i32
    %2 = arith.minsi %1, %c0_i32 : i32
    %c0_i32_0 = arith.constant 0 : i32
    %c0_i32_1 = arith.constant 0 : i32
    return %c0_i32_0, %2 : i32, i32
  }
  func.func @transform_2(%arg0: i32, %arg1: i32) -> (i32, i32) {
    %c0_i32 = arith.constant 0 : i32
    %c0_i32_0 = arith.constant 0 : i32
    %c0_i32_1 = arith.constant 0 : i32
    return %c0_i32, %c0_i32_0 : i32, i32
  }
  func.func @transform_3(%arg0: i32, %arg1: i32) -> (i32, i32, i32) {
    %c0_i32 = arith.constant 0 : i32
    %c0_i32_0 = arith.constant 0 : i32
    %c0_i32_1 = arith.constant 0 : i32
    return %arg0, %c0_i32, %c0_i32_0 : i32, i32, i32
  }
}

</mosaic_0001>

<llo_original>
// kernel: tpu_custom_call.1
$region0: #{tpu_custom_call.1}
  #allocation0 [shape = 'u32[]', space=smem, size = 0x4, offset = 0x4, fixed_abs, tag = 'smem constant byte address 0x4 - core index']
  #allocation1 [shape = 'u32[144,128]{1,0:T(1,128)}', space=vmem, size = 0x12000, scoped, tag = 'internal scratch']
  %s0 = inlined_call_operand.hbm [shape: f32[2,1024], index: 0, kind: input, shape index: {}]
  %s1 = inlined_call_operand.hbm [shape: f32[2,1024], index: 1, kind: input, shape index: {}]
  %s2 = inlined_call_operand.vmem [shape: f32[2,1], index: 2, kind: input, shape index: {}]
  %s3 = inlined_call_operand.hbm [shape: f32[1,8,128], index: 3, kind: output, shape index: {}]
  %s4 = sld [smem:[#allocation0]]
  $region34: #{tpu_custom_call.1} parent=0
    _
  %s6 = ssub.s32 1, %s4
  %s7 = scalar_select 0, %s6, %s4
  $region1: #{tpu_custom_call.1} parent=0
    #allocation2 [shape = 'u8[8192]{0}', space=vmem, size = 0x2000, scoped, tag = 'input window, operand 0, single buffered']
    #allocation3 [shape = 's32[1]{0}', space=sflag, size = 0x4, scoped, tag = 'scoped memory for tpu_custom_call.1']
    #allocation4 [shape = 's32[1]{0}', space=sflag, size = 0x4, scoped, tag = 'scoped memory for tpu_custom_call.1']
    #allocation5 [shape = 'u8[8192]{0}', space=vmem, size = 0x2000, scoped, tag = 'input window, operand 1, single buffered']
    #allocation6 [shape = 's32[1]{0}', space=sflag, size = 0x4, scoped, tag = 'scoped memory for tpu_custom_call.1']
    #allocation7 [shape = 'u8[4096]{0}', space=vmem, size = 0x1000, scoped, tag = 'output window, operand 0, single buffered']
    %8 = vsyncpa [#allocation3], 0
    %9 = vsyncpa [#allocation6], 0
    %10 = vsyncpa [#allocation4], 0
    // Predicated region
    $region2: #{tpu_custom_call.1} parent=1 // pred_check
      _
    $region3: #{tpu_custom_call.1} parent=1 // pred_check_branch
      %12 = sbr.rel (0) target = $region5
    $region4: #{tpu_custom_call.1} parent=1 // pred_region
      %s13 = sadd.s32 0, 0
      %p14 = scmp.lt.s32.totalorder %s13, 0
      %s15 = scalar_select %p14, %s13, 0
      %s16 = smul.u32 8, %s15
      %s18 = ssub.s32 256, 256
      %19 = vsyncadd [#allocation3], %s18
      %s20 = smul.addr %s16, 32
      %s21 = scalar_lea.hbm %s0, %s20
      %s23 = sshll.u32 [#allocation2], 4
      %s24 = int_to_ptr.vmem [resolvable:$true] %s23
      %26 = dma.hbm_to_vmem [thread:$0]  %s21, 256, %s24, [#allocation3]
    $region5: #{tpu_custom_call.1} parent=1 // pred_fallthru
      _
    // Predicated region
    $region6: #{tpu_custom_call.1} parent=1 // pred_check
      _
    $region7: #{tpu_custom_call.1} parent=1 // pred_check_branch
      %28 = sbr.rel (0) target = $region9
    $region8: #{tpu_custom_call.1} parent=1 // pred_region
      %s29 = sadd.s32 0, 0
      %p30 = scmp.lt.s32.totalorder %s29, 0
      %s31 = scalar_select %p30, %s29, 0
      %s32 = smul.u32 8, %s31
      %s34 = ssub.s32 256, 256
      %35 = vsyncadd [#allocation6], %s34
      %s36 = smul.addr %s32, 32
      %s37 = scalar_lea.hbm %s1, %s36
      %s39 = sshll.u32 [#allocation5], 4
      %s40 = int_to_ptr.vmem [resolvable:$true] %s39
      %42 = dma.hbm_to_vmem [thread:$0]  %s37, 256, %s40, [#allocation6]
    $region9: #{tpu_custom_call.1} parent=1 // pred_fallthru
      _
    // Predicated region
    $region10: #{tpu_custom_call.1} parent=1 // pred_check
      _
    $region11: #{tpu_custom_call.1} parent=1 // pred_check_branch
      %44 = sbr.rel (0) target = $region13
    $region12: #{tpu_custom_call.1} parent=1 // pred_region
      _
    $region13: #{tpu_custom_call.1} parent=1 // pred_fallthru
      _
    // Predicated region
    $region14: #{tpu_custom_call.1} parent=1 // pred_check
      _
    $region15: #{tpu_custom_call.1} parent=1 // pred_check_branch
      %46 = sbr.rel (0) target = $region17
    $region16: #{tpu_custom_call.1} parent=1 // pred_region
      %47 = dma.done [#allocation3], 256
    $region17: #{tpu_custom_call.1} parent=1 // pred_fallthru
      _
    // Predicated region
    $region18: #{tpu_custom_call.1} parent=1 // pred_check
      _
    $region19: #{tpu_custom_call.1} parent=1 // pred_check_branch
      %49 = sbr.rel (0) target = $region21
    $region20: #{tpu_custom_call.1} parent=1 // pred_region
      %50 = dma.done [#allocation6], 256
    $region21: #{tpu_custom_call.1} parent=1 // pred_fallthru
      _
    %s51 = sadd.s32 0, 0
    %p52 = scmp.lt.s32.totalorder %s51, 0
    %s53 = scalar_select %p52, %s51, 0
    %s54 = smul.u32 8, %s53
    %s55 = sadd.s32 0, 0
    %p56 = scmp.lt.s32.totalorder %s55, 0
    %s57 = scalar_select %p56, %s55, 0
    %s58 = smul.u32 8, %s57
    %p59 = scmp.eq.s32.totalorder 0, 0
    // Predicated region
    $region22: #{tpu_custom_call.1} parent=1 // pred_check
      %p60 = pneg %p59
    $region23: #{tpu_custom_call.1} parent=1 // pred_check_branch
      %62 = sbr.rel (%p60) target = $region25
    $region24: #{tpu_custom_call.1} parent=1 // pred_region
      %63 = vst [vmem:[#allocation7] sm:$0xff] 0.0
    $region25: #{tpu_custom_call.1} parent=1 // pred_fallthru
      _
    %v64 = vld [vmem:[#allocation2] sm:$0xff]
    %v65 = vld [vmem:[#allocation2 + $0x8] sm:$0xff]
    %v66 = vld [vmem:[#allocation5] sm:$0xff]
    %v67 = vld [vmem:[#allocation5 + $0x8] sm:$0xff]
    %v68 = vld [vmem:[%s2] sm:$0x3]
    %v69 = vxor.u32 %v64, 2147483648
    %v70 = vxor.u32 %v65, 2147483648
    %v71 = vmul.f32 %v69, 1.442695
    %v72 = vpow.pop %v71
    %v73 = vmul.f32 %v70, 1.442695
    %v74 = vpow.pop %v73
    %v75 = vadd.f32 %v72, 1.0
    %v76 = vadd.f32 %v74, 1.0
    %v77 = vrcp.pop %v75
    %v78 = vmul.f32 1.0, %v77
    %v79 = vrcp.pop %v76
    %v80 = vmul.f32 1.0, %v79
    %v81 = vadd.f32 %v78, %v66
    %v82 = vadd.f32 %v80, %v67
    %v85 = vcombine.high %v81, %v81
    %v87 = vunpack.c.l.s4 1983009808
    %v88 = vunpack.c.0.s8 %v87
    %v89 = vlaneseq
    %v90 = vshrl.u32 %v89, 7
    %v91 = vsub.s32 %v88, %v90
    %v92 = vrot.slane %v81, %v91
    %v94 = vunpack.c.l.s4 1983009808
    %v95 = vunpack.c.0.s8 %v94
    %v96 = vlaneseq
    %v97 = vshrl.u32 %v96, 7
    %v98 = vsub.s32 %v95, %v97
    %v99 = vrot.slane %v85, %v98
    %v100 = vcombine.high %v92, %v92
    %v101 = vcombine.high %v99, %v99
    %v102 = vcombine.high %v82, %v82
    %v104 = vunpack.c.l.s4 1983009808
    %v105 = vunpack.c.0.s8 %v104
    %v106 = vlaneseq
    %v107 = vshrl.u32 %v106, 7
    %v108 = vsub.s32 %v105, %v107
    %v109 = vrot.slane %v82, %v108
    %v111 = vunpack.c.l.s4 1983009808
    %v112 = vunpack.c.0.s8 %v111
    %v113 = vlaneseq
    %v114 = vshrl.u32 %v113, 7
    %v115 = vsub.s32 %v112, %v114
    %v116 = vrot.slane %v102, %v115
    %v117 = vcombine.high %v109, %v109
    %v118 = vcombine.high %v116, %v116
    %vm127 = vcmask 1041408
    %v128 = vsel %vm127, %v92, 0.0
    %v129 = vrot.slane %v128, 4
    %v130 = vadd.f32 %v128, %v129
    %v131 = vrot.slane %v130, 2
    %v132 = vadd.f32 %v130, %v131
    %v133 = vrot.slane %v132, 1
    %v134 = vadd.f32 %v132, %v133
    %v135 = vsel %vm127, %v100, 0.0
    %v136 = vrot.slane %v135, 4
    %v137 = vadd.f32 %v135, %v136
    %v138 = vrot.slane %v137, 2
    %v139 = vadd.f32 %v137, %v138
    %v140 = vrot.slane %v139, 1
    %v141 = vadd.f32 %v139, %v140
    %v142 = vsel %vm127, %v99, 0.0
    %v143 = vrot.slane %v142, 4
    %v144 = vadd.f32 %v142, %v143
    %v145 = vrot.slane %v144, 2
    %v146 = vadd.f32 %v144, %v145
    %v147 = vrot.slane %v146, 1
    %v148 = vadd.f32 %v146, %v147
    %v149 = vsel %vm127, %v101, 0.0
    %v150 = vrot.slane %v149, 4
    %v151 = vadd.f32 %v149, %v150
    %v152 = vrot.slane %v151, 2
    %v153 = vadd.f32 %v151, %v152
    %v154 = vrot.slane %v153, 1
    %v155 = vadd.f32 %v153, %v154
    %v156 = vsel %vm127, %v109, 0.0
    %v157 = vrot.slane %v156, 4
    %v158 = vadd.f32 %v156, %v157
    %v159 = vrot.slane %v158, 2
    %v160 = vadd.f32 %v158, %v159
    %v161 = vrot.slane %v160, 1
    %v162 = vadd.f32 %v160, %v161
    %v163 = vsel %vm127, %v117, 0.0
    %v164 = vrot.slane %v163, 4
    %v165 = vadd.f32 %v163, %v164
    %v166 = vrot.slane %v165, 2
    %v167 = vadd.f32 %v165, %v166
    %v168 = vrot.slane %v167, 1
    %v169 = vadd.f32 %v167, %v168
    %v170 = vsel %vm127, %v116, 0.0
    %v171 = vrot.slane %v170, 4
    %v172 = vadd.f32 %v170, %v171
    %v173 = vrot.slane %v172, 2
    %v174 = vadd.f32 %v172, %v173
    %v175 = vrot.slane %v174, 1
    %v176 = vadd.f32 %v174, %v175
    %v177 = vsel %vm127, %v118, 0.0
    %v178 = vrot.slane %v177, 4
    %v179 = vadd.f32 %v177, %v178
    %v180 = vrot.slane %v179, 2
    %v181 = vadd.f32 %v179, %v180
    %v182 = vrot.slane %v181, 1
    %v183 = vadd.f32 %v181, %v182
    %v184 = vadd.f32 %v134, 1.0
    %v185 = vadd.f32 %v141, 1.0
    %v186 = vadd.f32 %v148, 1.0
    %v187 = vadd.f32 %v155, 1.0
    %v188 = vadd.f32 %v162, 1.0
    %v189 = vadd.f32 %v169, 1.0
    %v190 = vadd.f32 %v176, 1.0
    %v191 = vadd.f32 %v183, 1.0
    %v192 = vrcp.pop %v184
    %v193 = vmul.f32 1.0, %v192
    %v194 = vrcp.pop %v185
    %v195 = vmul.f32 1.0, %v194
    %v196 = vrcp.pop %v186
    %v197 = vmul.f32 1.0, %v196
    %v198 = vrcp.pop %v187
    %v199 = vmul.f32 1.0, %v198
    %v200 = vrcp.pop %v188
    %v201 = vmul.f32 1.0, %v200
    %v202 = vrcp.pop %v189
    %v203 = vmul.f32 1.0, %v202
    %v204 = vrcp.pop %v190
    %v205 = vmul.f32 1.0, %v204
    %v206 = vrcp.pop %v191
    %v207 = vmul.f32 1.0, %v206
    %v208 = vmul.f32 %v78, 2.0
    %v209 = vmul.f32 %v80, 2.0
    %v210 = vmul.f32 %v208, %v66
    %v211 = vmul.f32 %v209, %v67
    %v212 = vadd.f32 %v210, 1.0
    %v213 = vadd.f32 %v211, 1.0
    %v222 = vcombine.low %v193, %v195
    %v223 = vcombine.low %v197, %v199
    %v225 = vunpack.c.l.s4 1983009808
    %v226 = vunpack.c.0.s8 %v225
    %v227 = vlaneseq
    %v228 = vshrl.u32 %v227, 7
    %v229 = vsub.s32 %v226, %v228
    %v230 = vrot.slane %v222, %v229
    %v232 = vunpack.c.l.s4 1983009808
    %v233 = vunpack.c.0.s8 %v232
    %v234 = vlaneseq
    %v235 = vshrl.u32 %v234, 7
    %v236 = vsub.s32 %v233, %v235
    %v237 = vrot.slane %v223, %v236
    %v238 = vcombine.low %v230, %v237
    %v239 = vcombine.low %v201, %v203
    %v240 = vcombine.low %v205, %v207
    %v242 = vunpack.c.l.s4 1983009808
    %v243 = vunpack.c.0.s8 %v242
    %v244 = vlaneseq
    %v245 = vshrl.u32 %v244, 7
    %v246 = vsub.s32 %v243, %v245
    %v247 = vrot.slane %v239, %v246
    %v249 = vunpack.c.l.s4 1983009808
    %v250 = vunpack.c.0.s8 %v249
    %v251 = vlaneseq
    %v252 = vshrl.u32 %v251, 7
    %v253 = vsub.s32 %v250, %v252
    %v254 = vrot.slane %v240, %v253
    %v255 = vcombine.low %v247, %v254
    %v258 = vmul.f32 %v212, %v238
    %v259 = vmul.f32 %v213, %v255
    %v260 = vsub.f32 1.0, %v258
    %v261 = vsub.f32 1.0, %v259
    %v262 = vsub.f32 0.0, %v78
    %v263 = vsub.f32 0.0, %v80
    %v264 = vadd.f32 %v262, 1.0
    %v265 = vlog2.pop %v264
    %v266 = vmul.f32 %v265, 0.6931472
    %v267 = vmul.f32 -0.5, %v262
    %v268 = vadd.f32 %v267, 1.0
    %v269 = vmul.f32 %v268, %v262
    %v270 = vand.u32 2147483647, %v262
    %vm271 = vcmp.lt.f32.partialorder %v270, 0.0004427343
    %v272 = vsel %vm271, %v269, %v266
    %v273 = vadd.f32 %v263, 1.0
    %v274 = vlog2.pop %v273
    %v275 = vmul.f32 %v274, 0.6931472
    %v276 = vmul.f32 -0.5, %v263
    %v277 = vadd.f32 %v276, 1.0
    %v278 = vmul.f32 %v277, %v263
    %v279 = vand.u32 2147483647, %v263
    %vm280 = vcmp.lt.f32.partialorder %v279, 0.0004427343
    %v281 = vsel %vm280, %v278, %v275
    %vm282 = vcmp.lt.f32.partialorder %v78, 1.0
    %vm283 = vcmp.lt.f32.partialorder %v80, 1.0
    %v284 = vadd.f32 %v64, %v272
    %v285 = vadd.f32 %v65, %v281
    %v286 = vsel %vm282, %v284, 0.0
    %v287 = vsel %vm283, %v285, 0.0
    %v288 = vmax.f32 %v286, -100.0
    %v289 = vmax.f32 %v287, -100.0
    %v290 = vmax.f32 %v272, -100.0
    %v291 = vmax.f32 %v281, -100.0
    %v292 = vmul.f32 %v66, %v288
    %v293 = vmul.f32 %v67, %v289
    %v294 = vsub.f32 1.0, %v66
    %v295 = vsub.f32 1.0, %v67
    %v296 = vmul.f32 %v294, %v290
    %v297 = vmul.f32 %v295, %v291
    %v298 = vadd.f32 %v292, %v296
    %v299 = vadd.f32 %v293, %v297
    %v300 = vsub.f32 0.0, %v298
    %v301 = vsub.f32 0.0, %v299
    %v302 = vadd.f32 %v300, %v260
    %v303 = vadd.f32 %v301, %v261
    %v306 = vcombine.high %v302, %v302
    %v308 = vunpack.c.l.s4 1983009808
    %v309 = vunpack.c.0.s8 %v308
    %v310 = vlaneseq
    %v311 = vshrl.u32 %v310, 7
    %v312 = vsub.s32 %v309, %v311
    %v313 = vrot.slane %v302, %v312
    %v315 = vunpack.c.l.s4 1983009808
    %v316 = vunpack.c.0.s8 %v315
    %v317 = vlaneseq
    %v318 = vshrl.u32 %v317, 7
    %v319 = vsub.s32 %v316, %v318
    %v320 = vrot.slane %v306, %v319
    %v321 = vcombine.high %v313, %v313
    %v322 = vcombine.high %v320, %v320
    %v323 = vcombine.high %v303, %v303
    %v325 = vunpack.c.l.s4 1983009808
    %v326 = vunpack.c.0.s8 %v325
    %v327 = vlaneseq
    %v328 = vshrl.u32 %v327, 7
    %v329 = vsub.s32 %v326, %v328
    %v330 = vrot.slane %v303, %v329
    %v332 = vunpack.c.l.s4 1983009808
    %v333 = vunpack.c.0.s8 %v332
    %v334 = vlaneseq
    %v335 = vshrl.u32 %v334, 7
    %v336 = vsub.s32 %v333, %v335
    %v337 = vrot.slane %v323, %v336
    %v338 = vcombine.high %v330, %v330
    %v339 = vcombine.high %v337, %v337
    %v348 = vsel %vm127, %v313, 0.0
    %v349 = vsel %vm127, %v321, 0.0
    %v350 = vadd.f32 %v348, %v349
    %v351 = vsel %vm127, %v320, 0.0
    %v352 = vadd.f32 %v350, %v351
    %v353 = vsel %vm127, %v322, 0.0
    %v354 = vadd.f32 %v352, %v353
    %v355 = vsel %vm127, %v330, 0.0
    %v356 = vadd.f32 %v354, %v355
    %v357 = vsel %vm127, %v338, 0.0
    %v358 = vadd.f32 %v356, %v357
    %v359 = vsel %vm127, %v337, 0.0
    %v360 = vadd.f32 %v358, %v359
    %v361 = vsel %vm127, %v339, 0.0
    %v362 = vadd.f32 %v360, %v361
    %363 = vadd.xlane.f32.xlu0 %v362
    %v364 = vpop.xlane.xlu0 %363
    %v365 = vld [vmem:[#allocation7] sm:$0xff]
    %v366 = vmul.f32 %v364, %v68
    %vm367 = vcmask 1024
    %v368 = vsel %vm367, %v366, 0.0
    %369 = vadd.xlane.f32.xlu0 %v368
    %v370 = vpop.xlane.xlu0 %369
    %v371 = vrot.slane %v370, 4
    %v372 = vadd.f32 %v370, %v371
    %v373 = vrot.slane %v372, 2
    %v374 = vadd.f32 %v372, %v373
    %v375 = vrot.slane %v374, 1
    %v376 = vadd.f32 %v374, %v375
    %s377 = vtos %v376
    %v378 = vstv %s377
    %v379 = vadd.f32 %v365, %v378
    %380 = vst [vmem:[#allocation7] sm:$0xff] %v379
    // Predicated region
    $region26: #{tpu_custom_call.1} parent=1 // pred_check
      _
    $region27: #{tpu_custom_call.1} parent=1 // pred_check_branch
      %382 = sbr.rel (0) target = $region29
    $region28: #{tpu_custom_call.1} parent=1 // pred_region
      %s384 = ssub.s32 128, 128
      %385 = vsyncadd [#allocation4], %s384
      %s387 = sshll.u32 [#allocation7], 4
      %s388 = int_to_ptr.vmem [resolvable:$true] %s387
      %390 = dma.vmem_to_hbm [thread:$0]  %s388, 128, %s3, [#allocation4]
    $region29: #{tpu_custom_call.1} parent=1 // pred_fallthru
      _
    // Predicated region
    $region30: #{tpu_custom_call.1} parent=1 // pred_check
      _
    $region31: #{tpu_custom_call.1} parent=1 // pred_check_branch
      %392 = sbr.rel (0) target = $region33
    $region32: #{tpu_custom_call.1} parent=1 // pred_region
      %393 = dma.done [#allocation4], 128
    $region33: #{tpu_custom_call.1} parent=1 // pred_fallthru
      _
    %394 = vsyncpa [#allocation3], 1
    %395 = vsyncpa [#allocation6], 1
    %396 = vsyncpa [#allocation4], 1

</llo_original>
